<compile_context>
chip_gen: v5e
topology: v5e:2x2
jax: 0.10.0
libtpu: 0.0.40
codegen_flags: <defaults>
</compile_context>

<pallas_src>
import math

import jax
import jax.numpy as jnp
from jax import lax
from jax.experimental import pallas as pl
from jax.experimental.pallas import tpu as pltpu

_EPS = 1e-5
_VMEM_LIMIT = 32 * 1024 * 1024    # explicit scoped-VMEM limit (portable v5e/v6e/v7x)
_VMEM_BUDGET = 12 * 1024 * 1024   # target bytes of double-buffered block per grid step


def _cdiv(a, b):
    return (a + b - 1) // b


def _round_up(x, m):
    return _cdiv(x, m) * m


def _lcm(a, b):
    return a * b // math.gcd(a, b)


# ---------------------------------------------------------------------------
# Kernel 1: conv-as-matmul (bf16 in, f32 acc), lane-dense bf16 output,
#           per-tile per-lane BN partial statistics.
# ---------------------------------------------------------------------------
def _conv_stats_kernel(p_ref, w_ref, y_ref, stat_ref):
    # p: (tile_r1, GROUP*K) bf16 grouped im2col patches
    # w: (GROUP*K, GROUP*Cout_pad) bf16 block-diagonal weight
    acc = jnp.dot(p_ref[...], w_ref[...], preferred_element_type=jnp.float32)
    s = jnp.sum(acc, axis=0, keepdims=True)           # (1, N_W) per-tile sum
    ss = jnp.sum(acc * acc, axis=0, keepdims=True)    # (1, N_W) per-tile sum-sq
    stat_ref[0] = jnp.concatenate([s, ss], axis=0)    # (2, N_W)
    y_ref[...] = acc.astype(y_ref.dtype)              # lane-dense bf16 intermediate


# ---------------------------------------------------------------------------
# Kernel 2: BatchNorm affine (precomputed scale/shift) + ReLU on a wide
#           lane-dense view of the bf16 intermediate.
# ---------------------------------------------------------------------------
def _bn_relu_kernel(y_ref, sc_ref, sh_ref, o_ref):
    y = y_ref[...].astype(jnp.float32)                # elementwise math in f32
    o_ref[...] = jnp.maximum(y * sc_ref[...] + sh_ref[...], 0.0).astype(o_ref.dtype)


# ---------------------------------------------------------------------------
# Wrapper: SimpleStemIN forward (NCHW API, PyTorch convention)
# ---------------------------------------------------------------------------
def simple_stem_in(x_nchw, w_oihw, gamma, beta):
    """Conv3x3(stride=2, pad=1, no bias) + BatchNorm2d(train stats) + ReLU."""
    N, Cin, H, W = x_nchw.shape
    Cout = w_oihw.shape[0]
    stride, pad = 2, 1
    Ho = (H + 2 * pad - 3) // stride + 1
    Wo = (W + 2 * pad - 3) // stride + 1
    M = N * Ho * Wo
    K = 9 * Cin

    # ---- channel padding so the lane-dense packing works for any Cout -------
    if Cout <= 128:
        cout_p = 1 << max(0, (Cout - 1).bit_length())   # next pow2 (divides 128)
    else:
        cout_p = _round_up(Cout, 128)
    group = max(1, 128 // cout_p)        # original rows folded per lane-dense row
    n_w = group * cout_p                 # kernel-1 output lane width (multiple of 128)
    k_big = group * K

    lane_w2 = cout_p * max(1, 512 // cout_p)   # kernel-2 lane width (multiple of 128)
    rows2 = lane_w2 // cout_p                  # original rows per kernel-2 row

    # ---- one chunk size (original output rows per grid step) for both kernels
    quantum = _lcm(16 * group, 16 * rows2)     # keeps both second-minor dims %16 == 0
    per_row_k1 = (2 * (_round_up(k_big, 128) * 2 + n_w * 2) + n_w * 4) // group + 1
    per_row_k2 = cout_p * 12                   # bf16 in + f32 out, double-buffered
    chunk_cap = max(quantum,
                    (_VMEM_BUDGET // max(per_row_k1, per_row_k2)) // quantum * quantum)
    chunk = max(quantum, min(chunk_cap, _round_up(_cdiv(M, 2), quantum)))
    n_tiles = _cdiv(M, chunk)
    m_pad = n_tiles * chunk

    tile_r1 = chunk // group
    tile_r2 = chunk // rows2
    r1_pad = m_pad // group
    r2_pad = m_pad // rows2

    # ---- light im2col, in bf16 (halved preprocessing traffic) ---------------
    # TODO(synk): fuse im2col into kernel 1 (strided in-kernel slices of a
    # padded-NHWC row band) to remove this HBM round-trip entirely.
    x = jnp.transpose(x_nchw, (0, 2, 3, 1)).astype(jnp.bfloat16)
    xp = jnp.pad(x, ((0, 0), (pad, pad), (pad, pad), (0, 0)))
    cols = [xp[:, ky:ky + stride * Ho:stride, kx:kx + stride * Wo:stride, :]
            for ky in range(3) for kx in range(3)]
    patches = jnp.concatenate(cols, axis=-1).reshape(M, K)
    patches = jnp.pad(patches, ((0, m_pad - M), (0, 0)))    # zero rows -> zero conv out
    patches = patches.reshape(r1_pad, k_big)                # grouped, contiguous view

    # OIHW -> (K, Cout) matching the patch ordering, then a GROUP-block-diagonal
    # (k_big, n_w) weight so the MXU directly emits the lane-dense layout.
    wmat = jnp.transpose(w_oihw, (2, 3, 1, 0)).reshape(K, Cout).astype(jnp.float32)
    wmat = jnp.pad(wmat, ((0, 0), (0, cout_p - Cout)))
    eye = jnp.eye(group, dtype=jnp.float32)
    w_big = (eye[:, None, :, None] * wmat[None, :, None, :]) \
        .reshape(k_big, n_w).astype(jnp.bfloat16)

    # ---- pass 1: tiled conv matmul + per-tile BN partial stats --------------
    y_dense, part = pl.pallas_call(
        _conv_stats_kernel,
        grid=(n_tiles,),
        in_specs=[
            pl.BlockSpec((tile_r1, k_big), lambda i: (i, 0)),
            pl.BlockSpec((k_big, n_w), lambda i: (0, 0)),
        ],
        out_specs=[
            pl.BlockSpec((tile_r1, n_w), lambda i: (i, 0)),
            pl.BlockSpec((1, 2, n_w), lambda i: (i, 0, 0)),
        ],
        out_shape=(
            jax.ShapeDtypeStruct((r1_pad, n_w), jnp.bfloat16),
            jax.ShapeDtypeStruct((n_tiles, 2, n_w), jnp.float32),
        ),
        compiler_params=pltpu.CompilerParams(
            dimension_semantics=("parallel",),
            vmem_limit_bytes=_VMEM_LIMIT,
        ),
        cost_estimate=pl.CostEstimate(
            flops=2 * r1_pad * k_big * n_w,
            transcendentals=0,
            bytes_accessed=r1_pad * k_big * 2 + k_big * n_w * 2
            + r1_pad * n_w * 2 + n_tiles * 2 * n_w * 4,
        ),
    )(patches, w_big)

    # ---- full-batch BN statistics (tiny reduction, done in XLA) -------------
    stats = jnp.sum(part, axis=0).reshape(2, group, cout_p).sum(axis=1)   # (2, cout_p)
    mean = stats[0] / M                    # true M: zero-padded rows contribute 0
    var = stats[1] / M - mean * mean       # biased variance (PyTorch training BN)
    g = jnp.pad(gamma.astype(jnp.float32), (0, cout_p - Cout), constant_values=1.0)
    b = jnp.pad(beta.astype(jnp.float32), (0, cout_p - Cout))
    scale = g * lax.rsqrt(var + _EPS)
    shift = b - mean * scale

    # ---- pass 2: wide lane-dense BN affine + ReLU ----------------------------
    y2 = y_dense.reshape(r2_pad, lane_w2)          # contiguous view of the same slab
    sc2 = jnp.tile(scale, rows2).reshape(1, lane_w2)
    sh2 = jnp.tile(shift, rows2).reshape(1, lane_w2)
    out_flat = pl.pallas_call(
        _bn_relu_kernel,
        grid=(n_tiles,),
        in_specs=[
            pl.BlockSpec((tile_r2, lane_w2), lambda i: (i, 0)),
            pl.BlockSpec((1, lane_w2), lambda i: (0, 0)),
            pl.BlockSpec((1, lane_w2), lambda i: (0, 0)),
        ],
        out_specs=pl.BlockSpec((tile_r2, lane_w2), lambda i: (i, 0)),
        out_shape=jax.ShapeDtypeStruct((r2_pad, lane_w2), jnp.float32),
        compiler_params=pltpu.CompilerParams(
            dimension_semantics=("parallel",),
            vmem_limit_bytes=_VMEM_LIMIT,
        ),
    )(y2, sc2, sh2)

    out = out_flat.reshape(m_pad, cout_p)[:M, :Cout].reshape(N, Ho, Wo, Cout)
    return jnp.transpose(out, (0, 3, 1, 2))        # back to NCHW


# ---------------------------------------------------------------------------
# Pure-JAX reference (NCHW, lax conv, f32) for correctness check
# ---------------------------------------------------------------------------
def _reference(x_nchw, w_oihw, gamma, beta):
    dn = ("NCHW", "OIHW", "NCHW")
    y = lax.conv_general_dilated(x_nchw, w_oihw, (2, 2), ((1, 1), (1, 1)),
                                 dimension_numbers=dn)
    m = jnp.mean(y, axis=(0, 2, 3), keepdims=True)
    v = jnp.mean((y - m) ** 2, axis=(0, 2, 3), keepdims=True)
    y = (y - m) * lax.rsqrt(v + _EPS) * gamma[None, :, None, None] \
        + beta[None, :, None, None]
    return jnp.maximum(y, 0.0)


if __name__ == "__main__":
    # SimpleStemIN(in_w=3, out_w=32); small ImageNet-ish input (NCHW).
    in_w, out_w = 3, 32
    N, H, W = 2, 32, 32

    key = jax.random.PRNGKey(0)
    kx, kw, kg, kb = jax.random.split(key, 4)
    x = jax.random.normal(kx, (N, in_w, H, W), jnp.float32)
    bound = 1.0 / (in_w * 9) ** 0.5                       # PyTorch Conv2d default init
    w = jax.random.uniform(kw, (out_w, in_w, 3, 3), jnp.float32, -bound, bound)
    # BN affine params (PyTorch init is ones/zeros; perturb so the affine path
    # is actually exercised -- forward semantics are unchanged).
    gamma = 1.0 + 0.1 * jax.random.normal(kg, (out_w,), jnp.float32)
    beta = 0.1 * jax.random.normal(kb, (out_w,), jnp.float32)

    out = simple_stem_in(x, w, gamma, beta)
    out = jax.block_until_ready(out)

    ref = _reference(x, w, gamma, beta)
    assert out.shape == ref.shape, (out.shape, ref.shape)
    err = float(jnp.max(jnp.abs(out - ref)))
    assert err < 5e-2, f"mismatch vs reference: {err}"
    print("KERNEL_OK")
</pallas_src>

<mosaic_0001>
module attributes {stable_mosaic.version = 11 : i64} {
  func.func @_conv_stats_kernel(%arg0: i32, %arg1: memref<64x108xbf16, #tpu.memory_space<vmem>>, %arg2: memref<108x128xbf16, #tpu.memory_space<vmem>>, %arg3: memref<64x128xbf16, #tpu.memory_space<vmem>>, %arg4: memref<1x2x128xf32, #tpu.memory_space<vmem>>) attributes {dimension_semantics = [#tpu.dimension_semantics<parallel>], iteration_bounds = array<i64: 2>, scalar_prefetch = 0 : i64, scratch_operands = 0 : i64, tpu.core_type = #tpu.core_type<tc>, window_params = [{transform_indices = @transform_0, window_bounds = array<i64: 64, 108>}, {pipeline_mode = #tpu.pipeline_mode<synchronous>, transform_indices = @transform_1, window_bounds = array<i64: 108, 128>}, {transform_indices = @transform_2, window_bounds = array<i64: 64, 128>}, {transform_indices = @transform_3, window_bounds = array<i64: 1, 2, 128>}]} {
    %c0 = arith.constant 0 : index
    %c0_0 = arith.constant 0 : index
    %0 = vector.load %arg1[%c0, %c0_0] : memref<64x108xbf16, #tpu.memory_space<vmem>>, vector<64x108xbf16>
    %c0_1 = arith.constant 0 : index
    %c0_2 = arith.constant 0 : index
    %1 = vector.load %arg2[%c0_1, %c0_2] : memref<108x128xbf16, #tpu.memory_space<vmem>>, vector<108x128xbf16>
    %cst = arith.constant dense<0.000000e+00> : vector<64x128xf32>
    %2 = tpu.matmul %0, %1, %cst {dimension_numbers = #tpu.dot_dimension_numbers<[1], [0], [0], [1], [0, 0, 1, 1], [], []>} : vector<64x108xbf16>, vector<108x128xbf16>, vector<64x128xf32> -> vector<64x128xf32>
    %cst_3 = arith.constant dense<0.000000e+00> : vector<128xf32>
    %3 = vector.multi_reduction <add>, %2, %cst_3 [0] : vector<64x128xf32> to vector<128xf32>
    %4 = vector.shape_cast %3 : vector<128xf32> to vector<1x128xf32>
    %5 = arith.mulf %2, %2 : vector<64x128xf32>
    %cst_4 = arith.constant dense<0.000000e+00> : vector<128xf32>
    %6 = vector.multi_reduction <add>, %5, %cst_4 [0] : vector<64x128xf32> to vector<128xf32>
    %7 = vector.shape_cast %6 : vector<128xf32> to vector<1x128xf32>
    %8 = tpu.concatenate %4, %7 in 0 : vector<1x128xf32>, vector<1x128xf32> -> vector<2x128xf32>
    %c0_5 = arith.constant 0 : index
    %c0_6 = arith.constant 0 : index
    %c0_7 = arith.constant 0 : index
    %9 = vector.load %arg4[%c0_5, %c0_6, %c0_7] : memref<1x2x128xf32, #tpu.memory_space<vmem>>, vector<1x2x128xf32>
    %10 = vector.shape_cast %9 : vector<1x2x128xf32> to vector<2x128xf32>
    %11 = vector.shape_cast %8 : vector<2x128xf32> to vector<1x2x128xf32>
    tpu.vector_store %arg4[%c0_5, %c0_6, %c0_7], %11 {strides = array<i32>} : memref<1x2x128xf32, #tpu.memory_space<vmem>>, vector<1x2x128xf32>,
    %12 = arith.truncf %2 : vector<64x128xf32> to vector<64x128xbf16>
    %c0_8 = arith.constant 0 : index
    %c0_9 = arith.constant 0 : index
    %13 = vector.load %arg3[%c0_8, %c0_9] : memref<64x128xbf16, #tpu.memory_space<vmem>>, vector<64x128xbf16>
    tpu.vector_store %arg3[%c0_8, %c0_9], %12 {strides = array<i32>} : memref<64x128xbf16, #tpu.memory_space<vmem>>, vector<64x128xbf16>,
    return
  }
  func.func @transform_0(%arg0: i32) -> (i32, i32) {
    %c0_i32 = arith.constant 0 : i32
    %c0_i32_0 = arith.constant 0 : i32
    return %arg0, %c0_i32 : i32, i32
  }
  func.func @transform_1(%arg0: i32) -> (i32, i32) {
    %c0_i32 = arith.constant 0 : i32
    %c0_i32_0 = arith.constant 0 : i32
    %c0_i32_1 = arith.constant 0 : i32
    return %c0_i32, %c0_i32_0 : i32, i32
  }
  func.func @transform_2(%arg0: i32) -> (i32, i32) {
    %c0_i32 = arith.constant 0 : i32
    %c0_i32_0 = arith.constant 0 : i32
    return %arg0, %c0_i32 : i32, i32
  }
  func.func @transform_3(%arg0: i32) -> (i32, i32, i32) {
    %c0_i32 = arith.constant 0 : i32
    %c0_i32_0 = arith.constant 0 : i32
    %c0_i32_1 = arith.constant 0 : i32
    return %arg0, %c0_i32, %c0_i32_0 : i32, i32, i32
  }
}

</mosaic_0001>

<llo_original>
// kernel: tpu_custom_call.1
$region0: #{tpu_custom_call.1}
  #allocation0 [shape = 'u32[]', space=smem, size = 0x4, offset = 0x4, fixed_abs, tag = 'smem constant byte address 0x4 - core index']
  #allocation1 [shape = 'u32[72,128]{1,0:T(1,128)}', space=vmem, size = 0x9000, scoped, tag = 'internal scratch']
  %s0 = inlined_call_operand.vmem [shape: bf16[128,108], index: 0, kind: input, shape index: {}]
  %s1 = inlined_call_operand.vmem [shape: bf16[108,128], index: 1, kind: input, shape index: {}]
  %s2 = inlined_call_operand.hbm [shape: bf16[128,128], index: 2, kind: output, shape index: {0}]
  %s3 = inlined_call_operand.hbm [shape: f32[2,2,128], index: 3, kind: output, shape index: {1}]
  %4 = xla_tuple %s2, %s3
  %s5 = sld [smem:[#allocation0]]
  $region49: #{tpu_custom_call.1} parent=0
    _
  %s7 = ssub.s32 1, %s5
  %s8 = scalar_select 0, %s7, %s5
  $region1: #{tpu_custom_call.1} parent=0
    #allocation2 [shape = 'u8[32768]{0}', space=vmem, size = 0x8000, scoped, tag = 'output window, operand 0']
    #allocation3 [shape = 's32[2]{0}', space=sflag, size = 0x8, scoped, tag = 'scoped memory for tpu_custom_call.1']
    #allocation4 [shape = 'u8[2048]{0}', space=vmem, size = 0x800, scoped, tag = 'output window, operand 1']
    #allocation5 [shape = 's32[2]{0}', space=sflag, size = 0x8, scoped, tag = 'scoped memory for tpu_custom_call.1']
    %9 = vsyncpa [#allocation3], 0
    %s10 = scalar_lea.sflag [#allocation3], 1
    %11 = vsyncpa %s10, 0
    %12 = vsyncpa [#allocation5], 0
    %s13 = scalar_lea.sflag [#allocation5], 1
    %14 = vsyncpa %s13, 0
    loop: start=0, step=1, limit=4
    $region2: #{tpu_custom_call.1} parent=1 // loop_pre_header
      _
    $region3: #{tpu_custom_call.1} parent=1 // loop_header
      %s16 = sphi 0, %s20
      %p17 = scmp.ge.s32.totalorder %s16, 4
      %s26 = sphi 0, %s28
      %s29 = sphi 0, %s26
      %s30 = sphi 0, %s29
      %s46 = sphi 0, %s30
      %s50 = sphi 0, %s50
      %s52 = sphi 0, %s50
      %s53 = sphi 0, %s52
      %s67 = sphi 0, %s53
      %s73 = sphi 0, %s75
      %s76 = sphi 0, %s73
      %s77 = sphi 0, %s76
      %s93 = sphi 0, %s77
      %s99 = sphi 0, %s101
      %s102 = sphi 0, %s99
      %s103 = sphi 0, %s102
      %s119 = sphi 0, %s103
    $region4: #{tpu_custom_call.1} parent=1 // loop_header_branch
      %19 = sbr.rel (%p17) target = $region8
    $region5: #{tpu_custom_call.1} parent=1 // loop_body
      %s21 = ssub.s32 %s16, 1
      %s22 = ssub.s32 %s16, 2
      %s23 = sadd.s32 %s16, 1
      %s24 = ssub.s32 %s16, %s23
      %p25 = scmp.eq.s32.totalorder %s24, 0
      %s27 = sadd.s32 %s26, 1
      %s28 = scalar_select %p25, %s26, %s27
      %p31 = pneg %p25
      %p32 = scmp.eq.s32.totalorder %s16, 1
      %p33 = por %p31, %p32
      %p34 = scmp.ne.s32.totalorder %s26, %s29
      %p35 = scmp.eq.s32.totalorder %s16, 0
      %p36 = por %p34, %p35
      %p37 = scmp.ne.s32.totalorder %s26, %s29
      %p38 = scmp.eq.s32.totalorder %s21, 1
      %p39 = por %p37, %p38
      %p40 = scmp.ne.s32.totalorder %s29, %s30
      %p41 = scmp.eq.s32.totalorder %s21, 0
      %p42 = por %p40, %p41
      %p43 = scmp.ne.s32.totalorder %s29, %s30
      %p44 = scmp.eq.s32.totalorder %s22, 1
      %p45 = por %p43, %p44
      %p47 = scmp.ne.s32.totalorder %s30, %s46
      %p48 = scmp.eq.s32.totalorder %s22, 0
      %p49 = por %p47, %p48
      %s51 = sadd.s32 %s50, 1
      %p54 = scmp.eq.s32.totalorder %s16, 1
      %p55 = scmp.ne.s32.totalorder %s50, %s52
      %p56 = scmp.eq.s32.totalorder %s16, 0
      %p57 = por %p55, %p56
      %p58 = scmp.ne.s32.totalorder %s50, %s52
      %p59 = scmp.eq.s32.totalorder %s21, 1
      %p60 = por %p58, %p59
      %p61 = scmp.ne.s32.totalorder %s52, %s53
      %p62 = scmp.eq.s32.totalorder %s21, 0
      %p63 = por %p61, %p62
      %p64 = scmp.ne.s32.totalorder %s52, %s53
      %p65 = scmp.eq.s32.totalorder %s22, 1
      %p66 = por %p64, %p65
      %p68 = scmp.ne.s32.totalorder %s53, %s67
      %p69 = scmp.eq.s32.totalorder %s22, 0
      %p70 = por %p68, %p69
      %s71 = ssub.s32 %s16, %s23
      %p72 = scmp.eq.s32.totalorder %s71, 0
      %s74 = sadd.s32 %s73, 1
      %s75 = scalar_select %p72, %s73, %s74
      %p78 = pneg %p72
      %p79 = scmp.eq.s32.totalorder %s16, 1
      %p80 = por %p78, %p79
      %p81 = scmp.ne.s32.totalorder %s73, %s76
      %p82 = scmp.eq.s32.totalorder %s16, 0
      %p83 = por %p81, %p82
      %p84 = scmp.ne.s32.totalorder %s73, %s76
      %p85 = scmp.eq.s32.totalorder %s21, 1
      %p86 = por %p84, %p85
      %p87 = scmp.ne.s32.totalorder %s76, %s77
      %p88 = scmp.eq.s32.totalorder %s21, 0
      %p89 = por %p87, %p88
      %p90 = scmp.ne.s32.totalorder %s76, %s77
      %p91 = scmp.eq.s32.totalorder %s22, 1
      %p92 = por %p90, %p91
      %p94 = scmp.ne.s32.totalorder %s77, %s93
      %p95 = scmp.eq.s32.totalorder %s22, 0
      %p96 = por %p94, %p95
      %s97 = ssub.s32 %s16, %s23
      %p98 = scmp.eq.s32.totalorder %s97, 0
      %s100 = sadd.s32 %s99, 1
      %s101 = scalar_select %p98, %s99, %s100
      %p104 = pneg %p98
      %p105 = scmp.eq.s32.totalorder %s16, 1
      %p106 = por %p104, %p105
      %p107 = scmp.ne.s32.totalorder %s99, %s102
      %p108 = scmp.eq.s32.totalorder %s16, 0
      %p109 = por %p107, %p108
      %p110 = scmp.ne.s32.totalorder %s99, %s102
      %p111 = scmp.eq.s32.totalorder %s21, 1
      %p112 = por %p110, %p111
      %p113 = scmp.ne.s32.totalorder %s102, %s103
      %p114 = scmp.eq.s32.totalorder %s21, 0
      %p115 = por %p113, %p114
      %p116 = scmp.ne.s32.totalorder %s102, %s103
      %p117 = scmp.eq.s32.totalorder %s22, 1
      %p118 = por %p116, %p117
      %p120 = scmp.ne.s32.totalorder %s103, %s119
      %p121 = scmp.eq.s32.totalorder %s22, 0
      %p122 = por %p120, %p121
      %p123 = scmp.le.s32.totalorder 1, %s16
      %p124 = scmp.lt.s32.totalorder %s16, 3
      %p125 = pnand %p123, %p124
      %p126 = pneg %p125
      // Predicated region
      $region9: #{tpu_custom_call.1} parent=5 // pred_check
        _
      $region10: #{tpu_custom_call.1} parent=5 // pred_check_branch
        %128 = sbr.rel (%p125) target = $region12
      $region11: #{tpu_custom_call.1} parent=5 // pred_region
        %s129 = ssub.s32 %s16, 1
        // Predicated region
        $region13: #{tpu_custom_call.1} parent=11 // pred_check
          %p130 = pneg %p63
        $region14: #{tpu_custom_call.1} parent=11 // pred_check_branch
          %132 = sbr.rel (%p130) target = $region16
        $region15: #{tpu_custom_call.1} parent=11 // pred_region
          _
        $region16: #{tpu_custom_call.1} parent=11 // pred_fallthru
          _
      $region12: #{tpu_custom_call.1} parent=5 // pred_fallthru
        _
      %p133 = scmp.lt.s32.totalorder %s16, 2
      // Predicated region
      $region17: #{tpu_custom_call.1} parent=5 // pred_check
        %p134 = pneg %p133
      $region18: #{tpu_custom_call.1} parent=5 // pred_check_branch
        %136 = sbr.rel (%p134) target = $region20
      $region19: #{tpu_custom_call.1} parent=5 // pred_region
        // Predicated region
        $region21: #{tpu_custom_call.1} parent=19 // pred_check
          %p137 = pneg %p36
        $region22: #{tpu_custom_call.1} parent=19 // pred_check_branch
          %139 = sbr.rel (%p137) target = $region24
        $region23: #{tpu_custom_call.1} parent=19 // pred_region
          %s140 = smul.u32 8, %s16
          %p141 = scmp.lt.s32.totalorder %s140, 15
          %s142 = scalar_select %p141, %s140, 15
          %s143 = smul.addr %s142, 4
          %s144 = scalar_lea.vmem %s0, %s143
          %s145 = smul.u32 8, %s16
        $region24: #{tpu_custom_call.1} parent=19 // pred_fallthru
          _
      $region20: #{tpu_custom_call.1} parent=5 // pred_fallthru
        _
      %p146 = scmp.le.s32.totalorder 1, %s16
      %p147 = scmp.lt.s32.totalorder %s16, 3
      %p148 = pnand %p146, %p147
      %p149 = pneg %p148
      // Predicated region
      $region25: #{tpu_custom_call.1} parent=5 // pred_check
        _
      $region26: #{tpu_custom_call.1} parent=5 // pred_check_branch
        %151 = sbr.rel (%p148) target = $region28
      $region27: #{tpu_custom_call.1} parent=5 // pred_region
        %s152 = ssub.s32 %s16, 1
        %s153 = smul.u32 8, %s21
        %p154 = scmp.lt.s32.totalorder %s153, 15
        %s155 = scalar_select %p154, %s153, 15
        %s156 = smul.addr %s155, 4
        %s157 = scalar_lea.vmem %s0, %s156
        %p158 = pneg %p42
        %p159 = pneg %p39
        %p160 = pneg %p63
        %p161 = pneg %p60
        %p162 = pneg %p89
        %p163 = pneg %p86
        %s164 = sand.u32 %s76, 1
        %s165 = scalar_lea.sflag [#allocation3], %s164
        %s166 = sand.u32 %s76, 1
        %s167 = smul.addr %s166, 32
        %s168 = scalar_lea.vmem [#allocation2], %s167
        %p169 = pneg %p115
        %p170 = pneg %p112
        %s171 = sand.u32 %s102, 1
        %s172 = scalar_lea.sflag [#allocation5], %s171
        %s173 = sand.u32 %s102, 1
        %s174 = smul.addr %s173, 2
        %s175 = scalar_lea.vmem [#allocation4], %s174
        %s176 = smul.u32 8, %s21
        %p177 = scmp.lt.s32.totalorder %s176, 15
        %s178 = scalar_select %p177, %s176, 15
        %s179 = smul.addr %s178, 4
        %s180 = scalar_lea.vmem %s0, %s179
        %s181 = smul.u32 8, %s21
        %s182 = smul.u32 8, %s21
        %v184 = vld [vmem:[%s180] sm:$0xf]
        %v185 = vld [vmem:[%s180 + $0x4] sm:$0xf]
        %v186 = vld [vmem:[%s180 + $0x8] sm:$0xf]
        %v187 = vld [vmem:[%s180 + $0xc] sm:$0xf]
        %v188 = vld [vmem:[%s180 + $0x10] sm:$0xf]
        %v189 = vld [vmem:[%s180 + $0x14] sm:$0xf]
        %v190 = vld [vmem:[%s180 + $0x18] sm:$0xf]
        %v191 = vld [vmem:[%s180 + $0x1c] sm:$0xf]
        %v192 = vld [vmem:[%s1] sm:$0xf]
        %v193 = vld [vmem:[%s1 + $0x4] sm:$0xf]
        %v194 = vld [vmem:[%s1 + $0x8] sm:$0xf]
        %v195 = vld [vmem:[%s1 + $0xc] sm:$0xf]
        %v196 = vld [vmem:[%s1 + $0x10] sm:$0xf]
        %v197 = vld [vmem:[%s1 + $0x14] sm:$0xf]
        %v198 = vld [vmem:[%s1 + $0x18] sm:$0xf]
        %v199 = vld [vmem:[%s1 + $0x1c] sm:$0xf]
        %v200 = vld [vmem:[%s1 + $0x20] sm:$0xf]
        %v201 = vld [vmem:[%s1 + $0x24] sm:$0xf]
        %v202 = vld [vmem:[%s1 + $0x28] sm:$0xf]
        %v203 = vld [vmem:[%s1 + $0x2c] sm:$0xf]
        %v204 = vld [vmem:[%s1 + $0x30] sm:$0xf]
        %v205 = vld [vmem:[%s1 + $0x34] sm:$0x3]
        %v214 = vunpack.c.l.b16 %v184
        %v215 = vunpack.c.l.b16 %v185
        %v216 = vunpack.c.l.b16 %v186
        %v217 = vunpack.c.l.b16 %v187
        %v218 = vunpack.c.l.b16 %v188
        %v219 = vunpack.c.l.b16 %v189
        %v220 = vunpack.c.l.b16 %v190
        %v221 = vunpack.c.l.b16 %v191
        %v222 = vpack.c.b16 %v215, %v214
        %v223 = vpack.c.b16 %v217, %v216
        %v224 = vpack.c.b16 %v219, %v218
        %v225 = vpack.c.b16 %v221, %v220
        %v240 = vunpack.c.l.b16 %v192
        %v241 = vunpack.c.l.b16 %v193
        %v242 = vunpack.c.l.b16 %v194
        %v243 = vunpack.c.l.b16 %v195
        %v244 = vunpack.c.l.b16 %v196
        %v245 = vunpack.c.l.b16 %v197
        %v246 = vunpack.c.l.b16 %v198
        %v247 = vunpack.c.l.b16 %v199
        %v248 = vunpack.c.l.b16 %v200
        %v249 = vunpack.c.l.b16 %v201
        %v250 = vunpack.c.l.b16 %v202
        %v251 = vunpack.c.l.b16 %v203
        %v252 = vunpack.c.l.b16 %v204
        %v253 = vunpack.c.l.b16 %v205
        %v254 = vpack.c.b16 %v241, %v240
        %v255 = vpack.c.b16 %v243, %v242
        %v256 = vpack.c.b16 %v245, %v244
        %v257 = vpack.c.b16 %v247, %v246
        %v258 = vpack.c.b16 %v249, %v248
        %v259 = vpack.c.b16 %v251, %v250
        %v260 = vpack.c.b16 %v253, %v252
        %vm267 = vcmask 883712
        %v269 = vsel %vm267, %v222, 0
        %v272 = vsel %vm267, %v223, 0
        %v275 = vsel %vm267, %v224, 0
        %v278 = vsel %vm267, %v225, 0
        %vm280 = vcmask 1045504
        %v282 = vsel %vm280, %v260, 0
        %284 = vmatpush.bf16.msra.mxu0 0
        %285 = vmatpush.bf16.msra.mxu0 %v282
        %286 = vmatpush.bf16.msra.mxu0 %v259
        %287 = vmatpush.bf16.msra.mxu0 %v258
        %288 = vmatpush.bf16.msra.mxu0 %v257
        %289 = vmatpush.bf16.msra.mxu0 %v256
        %290 = vmatpush.bf16.msra.mxu0 %v255
        %291 = vmatpush.bf16.msra.mxu0 %v254
        %292 = vmatmul.bf16.gmra.mxu0 %v269
        %v293 = vpop.f32.mrf.mxu0
        %v294 = vadd.f32 0.0, %v293
        %v295 = vpop.f32.mrf.mxu0
        %v296 = vadd.f32 0.0, %v295
        %297 = vmatmul.bf16.gmra.mxu0 %v272
        %v298 = vpop.f32.mrf.mxu0
        %v299 = vadd.f32 0.0, %v298
        %v300 = vpop.f32.mrf.mxu0
        %v301 = vadd.f32 0.0, %v300
        %302 = vmatmul.bf16.gmra.mxu0 %v275
        %v303 = vpop.f32.mrf.mxu0
        %v304 = vadd.f32 0.0, %v303
        %v305 = vpop.f32.mrf.mxu0
        %v306 = vadd.f32 0.0, %v305
        %307 = vmatmul.bf16.gmra.mxu0 %v278
        %v308 = vpop.f32.mrf.mxu0
        %v309 = vadd.f32 0.0, %v308
        %v310 = vpop.f32.mrf.mxu0
        %v311 = vadd.f32 0.0, %v310
        %312 = vdwg.mxu0
        %v313 = vadd.f32 %v294, %v296
        %v314 = vadd.f32 %v313, %v299
        %v315 = vadd.f32 %v314, %v301
        %v316 = vadd.f32 %v315, %v304
        %v317 = vadd.f32 %v316, %v306
        %v318 = vadd.f32 %v317, %v309
        %v319 = vadd.f32 %v318, %v311
        %v320 = vrot.slane %v319, 4
        %v321 = vadd.f32 %v319, %v320
        %v322 = vrot.slane %v321, 2
        %v323 = vadd.f32 %v321, %v322
        %v324 = vrot.slane %v323, 1
        %v325 = vadd.f32 %v323, %v324
        %v326 = vmul.f32 %v294, %v294
        %v327 = vmul.f32 %v296, %v296
        %v328 = vmul.f32 %v299, %v299
        %v329 = vmul.f32 %v301, %v301
        %v330 = vmul.f32 %v304, %v304
        %v331 = vmul.f32 %v306, %v306
        %v332 = vmul.f32 %v309, %v309
        %v333 = vmul.f32 %v311, %v311
        %v334 = vadd.f32 %v326, %v327
        %v335 = vadd.f32 %v334, %v328
        %v336 = vadd.f32 %v335, %v329
        %v337 = vadd.f32 %v336, %v330
        %v338 = vadd.f32 %v337, %v331
        %v339 = vadd.f32 %v338, %v332
        %v340 = vadd.f32 %v339, %v333
        %v341 = vrot.slane %v340, 4
        %v342 = vadd.f32 %v340, %v341
        %v343 = vrot.slane %v342, 2
        %v344 = vadd.f32 %v342, %v343
        %v345 = vrot.slane %v344, 1
        %v346 = vadd.f32 %v344, %v345
        %vm347 = vcmask 1040384
        %v348 = vsel %vm347, %v325, %v346
        %349 = vst [vmem:[%s175] sm:$0x3] %v348
        %v350 = vpack.c.bf16 %v294, %v294
        %v351 = vpack.c.bf16 %v296, %v296
        %v352 = vpack.c.bf16 %v299, %v299
        %v353 = vpack.c.bf16 %v301, %v301
        %v354 = vpack.c.bf16 %v304, %v304
        %v355 = vpack.c.bf16 %v306, %v306
        %v356 = vpack.c.bf16 %v309, %v309
        %v357 = vpack.c.bf16 %v311, %v311
        %358 = vst [vmem:[%s168] sm:$0xf] %v350
        %359 = vst [vmem:[%s168 + $0x4] sm:$0xf] %v351
        %360 = vst [vmem:[%s168 + $0x8] sm:$0xf] %v352
        %361 = vst [vmem:[%s168 + $0xc] sm:$0xf] %v353
        %362 = vst [vmem:[%s168 + $0x10] sm:$0xf] %v354
        %363 = vst [vmem:[%s168 + $0x14] sm:$0xf] %v355
        %364 = vst [vmem:[%s168 + $0x18] sm:$0xf] %v356
        %365 = vst [vmem:[%s168 + $0x1c] sm:$0xf] %v357
        %s366 = sand.u32 %s76, 1
        %s367 = scalar_lea.sflag [#allocation3], %s366
        %s368 = sand.u32 %s76, 1
        %s369 = smul.addr %s368, 32
        %s370 = scalar_lea.vmem [#allocation2], %s369
        %s371 = sand.u32 %s102, 1
        %s372 = scalar_lea.sflag [#allocation5], %s371
        %s373 = sand.u32 %s102, 1
        %s374 = smul.addr %s373, 2
        %s375 = scalar_lea.vmem [#allocation4], %s374
        // Predicated region
        $region29: #{tpu_custom_call.1} parent=27 // pred_check
          %p376 = pneg %p86
        $region30: #{tpu_custom_call.1} parent=27 // pred_check_branch
          %378 = sbr.rel (%p376) target = $region32
        $region31: #{tpu_custom_call.1} parent=27 // pred_region
          %s379 = smul.u32 8, %s21
          %381 = vsyncadd %s367, 0
          %s382 = smul.addr %s379, 4
          %s383 = scalar_lea.hbm %s2, %s382
          %s384 = sshll.u32 %s370, 4
          %s385 = int_to_ptr.vmem [resolvable:$true] %s384
          %s386 = sshll.u32 %s383, 4
          %s387 = int_to_ptr.hbm [resolvable:$true] %s386
          %392 = dma.vmem_to_hbm [thread:$0]  %s385, 512, %s387, %s367, 64, 64, 4
        $region32: #{tpu_custom_call.1} parent=27 // pred_fallthru
          _
        // Predicated region
        $region33: #{tpu_custom_call.1} parent=27 // pred_check
          %p393 = pneg %p112
        $region34: #{tpu_custom_call.1} parent=27 // pred_check_branch
          %395 = sbr.rel (%p393) target = $region36
        $region35: #{tpu_custom_call.1} parent=27 // pred_region
          %397 = vsyncadd %s372, 0
          %s398 = smul.addr %s21, 2
          %s399 = scalar_lea.hbm %s3, %s398
          %s401 = sshll.u32 %s375, 4
          %s402 = int_to_ptr.vmem [resolvable:$true] %s401
          %s403 = sshll.u32 %s399, 4
          %s404 = int_to_ptr.hbm [resolvable:$true] %s403
          %406 = dma.vmem_to_hbm [thread:$0]  %s402, 32, %s404, %s372
        $region36: #{tpu_custom_call.1} parent=27 // pred_fallthru
          _
      $region28: #{tpu_custom_call.1} parent=5 // pred_fallthru
        _
      %p407 = scmp.le.s32.totalorder 2, %s16
      // Predicated region
      $region37: #{tpu_custom_call.1} parent=5 // pred_check
        %p408 = pneg %p407
      $region38: #{tpu_custom_call.1} parent=5 // pred_check_branch
        %410 = sbr.rel (%p408) target = $region40
      $region39: #{tpu_custom_call.1} parent=5 // pred_region
        %s411 = ssub.s32 %s16, 2
        // Predicated region
        $region41: #{tpu_custom_call.1} parent=39 // pred_check
          %p412 = pneg %p92
        $region42: #{tpu_custom_call.1} parent=39 // pred_check_branch
          %414 = sbr.rel (%p412) target = $region44
        $region43: #{tpu_custom_call.1} parent=39 // pred_region
          %s415 = sand.u32 %s77, 1
          %s416 = scalar_lea.sflag [#allocation3], %s415
          %s417 = sand.u32 %s77, 1
          %s418 = smul.addr %s417, 32
          %s419 = scalar_lea.vmem [#allocation2], %s418
          %421 = dma.done %s416, 512
        $region44: #{tpu_custom_call.1} parent=39 // pred_fallthru
          _
        // Predicated region
        $region45: #{tpu_custom_call.1} parent=39 // pred_check
          %p422 = pneg %p118
        $region46: #{tpu_custom_call.1} parent=39 // pred_check_branch
          %424 = sbr.rel (%p422) target = $region48
        $region47: #{tpu_custom_call.1} parent=39 // pred_region
          %s425 = sand.u32 %s103, 1
          %s426 = scalar_lea.sflag [#allocation5], %s425
          %s427 = sand.u32 %s103, 1
          %s428 = smul.addr %s427, 2
          %s429 = scalar_lea.vmem [#allocation4], %s428
          %431 = dma.done %s426, 32
        $region48: #{tpu_custom_call.1} parent=39 // pred_fallthru
          _
      $region40: #{tpu_custom_call.1} parent=5 // pred_fallthru
        _
    $region6: #{tpu_custom_call.1} parent=1 // loop_footer
      %s20 = sadd.s32 1, %s16
    $region7: #{tpu_custom_call.1} parent=1 // loop_footer_branch
      %15 = sbr.rel target = $region3
    $region8: #{tpu_custom_call.1} parent=1 // loop_exit
      _
    %432 = vsyncpa [#allocation3], 1
    %s433 = scalar_lea.sflag [#allocation3], 1
    %434 = vsyncpa %s433, 1
    %435 = vsyncpa [#allocation5], 1
    %s436 = scalar_lea.sflag [#allocation5], 1
    %437 = vsyncpa %s436, 1

</llo_original>
